<compile_context>
chip_gen: v6e
topology: v6e:2x2x1
jax: 0.10.0
libtpu: 0.0.40
codegen_flags: <defaults>
</compile_context>

<pallas_src>
import numpy as np
import jax
import jax.numpy as jnp
from jax.experimental import pallas as pl
from jax.experimental.pallas import tpu as pltpu

N_ATOMS = 16   # atoms
D_IN    = 16   # raw PFP input feature dim
FEAT    = 32   # scalar/vector channel dim
HIDDEN  = 32   # gating MLP hidden dim
assert HIDDEN == FEAT  # required by the bias/weight packing below


def _combined_kernel(xp_ref, wwide_ref, wnarrow_ref, out_ref):
    N, F = N_ATOMS, FEAT

    x = xp_ref[0:N, :]                               # (N, D_IN)
    pos_col = xp_ref[N:4 * N, 0:1]                   # (3N, 1): [pos_x; pos_y; pos_z]

    # biases live in rows [2F, 2F+4) of the narrow slab: [b0; bg1; bg2s; bg2v]
    b_all = wnarrow_ref[2 * F:2 * F + 4, :]          # (4, F)
    b0   = b_all[0:1, :]
    bg1  = b_all[1:2, :]
    bg2s = b_all[2:3, :]
    bg2v = b_all[3:4, :]

    # ---- frozen "WrappedPFP" featurizer: one fused dot for [w0 | wv | 0]
    feat = jnp.dot(x, wwide_ref[0:D_IN, :],
                   preferred_element_type=jnp.float32)         # (N, 4F), lanes>=2F are 0
    s = jnp.maximum(feat[:, 0:F] + b0, 0.0)                    # scalar features (N, F)
    u = feat[:, F:2 * F]                                       # (N, F)

    # vector features with the 3 Cartesian components stacked on sublanes
    u3 = jnp.concatenate([u, u, u], axis=0)                    # (3N, F)
    v = pos_col * u3                                           # (3N, F)

    # ---- gated equivariant block: single dot produces both v1 and v2
    v12 = jnp.dot(v, wwide_ref[D_IN:D_IN + F, 0:2 * F],
                  preferred_element_type=jnp.float32)          # (3N, 2F)
    v1 = v12[:, 0:F]                                           # (3N, F)
    v2 = v12[:, F:2 * F]                                       # (3N, F)
    v2sq = v2 * v2
    v2_norm = jnp.sqrt(v2sq[0:N] + v2sq[N:2 * N] + v2sq[2 * N:3 * N] + 1e-8)  # (N, F)

    # gating MLP: [s | v2_norm] @ [wg1s; wg1v], then one dot for both gates
    gate_in = jnp.concatenate([s, v2_norm], axis=1)            # (N, 2F)
    h = jnp.dot(gate_in, wnarrow_ref[0:2 * F, :],
                preferred_element_type=jnp.float32) + bg1      # (N, H)
    h = h * jax.nn.sigmoid(h)                                  # SiLU

    gates = jnp.dot(h, wwide_ref[D_IN:D_IN + F, 2 * F:4 * F],
                    preferred_element_type=jnp.float32)        # (N, 2F)
    gate_s = gates[:, 0:F] + bg2s                              # (N, F)
    gate_v = gates[:, F:2 * F] + bg2v                          # (N, F)

    s_out = gate_s
    v_out = v1 * jnp.concatenate([gate_v, gate_v, gate_v], axis=0)   # (3N, F)

    # ---- readout heads: one dot gives the scalar head and all 3 vector heads
    heads = jnp.dot(jnp.concatenate([s_out, v_out], axis=0),
                    wnarrow_ref[2 * F + 8:2 * F + 8 + F, :],
                    preferred_element_type=jnp.float32)        # (4N, F); col0=wso, col1=wvo
    sc_sum = jnp.sum(heads[0:N, 0:1], keepdims=True)           # (1, 1)
    vec = heads[N:4 * N, 1:2]                                  # (3N, 1)

    # per-component columns -> (N, 3) slabs for the 3x3 contraction
    vec_n3 = jnp.concatenate([vec[0:N], vec[N:2 * N], vec[2 * N:3 * N]], axis=1)
    pos_n3 = jnp.concatenate([pos_col[0:N], pos_col[N:2 * N], pos_col[2 * N:3 * N]],
                             axis=1)                           # (N, 3)

    # dielectric = sc_sum * I3 + 0.5 * (vec^T pos + pos^T vec), via MXU
    tn = (((0,), (0,)), ((), ()))                              # contract atom axis
    m  = jax.lax.dot_general(vec_n3, pos_n3, tn,
                             preferred_element_type=jnp.float32)   # (3, 3)
    mt = jax.lax.dot_general(pos_n3, vec_n3, tn,
                             preferred_element_type=jnp.float32)   # (3, 3) = m.T

    ri = jax.lax.broadcasted_iota(jnp.int32, (3, 3), 0)
    ci = jax.lax.broadcasted_iota(jnp.int32, (3, 3), 1)
    eye3 = (ri == ci).astype(jnp.float32)

    out_ref[...] = 0.5 * (m + mt) + sc_sum * eye3              # one vector store


def init_params(key):
    ks = jax.random.split(key, 12)
    def lin(k, fan_in, shape):
        return jax.random.normal(k, shape, jnp.float32) / np.sqrt(fan_in)
    return {
        "w0":   lin(ks[0], D_IN, (D_IN, FEAT)),
        "b0":   jnp.zeros((1, FEAT), jnp.float32),
        "wv":   lin(ks[1], D_IN, (D_IN, FEAT)),
        "w1":   lin(ks[2], FEAT, (FEAT, FEAT)),
        "w2":   lin(ks[3], FEAT, (FEAT, FEAT)),
        "wg1s": lin(ks[4], FEAT, (FEAT, HIDDEN)),
        "wg1v": lin(ks[5], FEAT, (FEAT, HIDDEN)),
        "bg1":  jnp.zeros((1, HIDDEN), jnp.float32),
        "wg2s": lin(ks[6], HIDDEN, (HIDDEN, FEAT)),
        "wg2v": lin(ks[7], HIDDEN, (HIDDEN, FEAT)),
        "bg2s": jnp.zeros((1, FEAT), jnp.float32),
        "bg2v": jnp.zeros((1, FEAT), jnp.float32),
        "wso":  lin(ks[8], FEAT, (FEAT, 1)),
        "wvo":  lin(ks[9], FEAT, (FEAT, 1)),
    }


def combined_model(x, positions, p):
    # Host-side packing of the frozen parameters / inputs into 3 DMA slabs.
    # Slab 1 (lane width 128): featurizer + equivariant-block weights.
    w_feat = jnp.concatenate([p["w0"], p["wv"]], axis=1)                 # (D_IN, 2F)
    w_feat = jnp.pad(w_feat, ((0, 0), (0, 2 * FEAT)))                    # (D_IN, 4F)
    w_12g2 = jnp.concatenate([p["w1"], p["w2"], p["wg2s"], p["wg2v"]],
                             axis=1)                                     # (F, 4F)
    w_wide = jnp.concatenate([w_feat, w_12g2], axis=0)                   # (D_IN+F, 4F)

    # Slab 2 (lane width 32): gating weights, biases, readout heads.
    # Rows: [wg1s; wg1v] (2F) | [b0; bg1; bg2s; bg2v] (4) | pad (4) | [wso|wvo|0] (F)
    w_out = jnp.concatenate([p["wso"], p["wvo"]], axis=1)                # (F, 2)
    w_out = jnp.pad(w_out, ((0, 0), (0, FEAT - 2)))                      # (F, F)
    w_narrow = jnp.concatenate(
        [p["wg1s"], p["wg1v"],
         p["b0"], p["bg1"], p["bg2s"], p["bg2v"],
         jnp.zeros((4, FEAT), jnp.float32),
         w_out], axis=0)                                                 # (2F+8+F, F)

    # Slab 3: atom features + positions. positions (N, 3) -> (3N, 1) component
    # blocks stacked on the sublane axis, lane-padded to D_IN so they share a slab.
    pos_col = jnp.transpose(positions, (1, 0)).reshape(3 * N_ATOMS, 1)
    pos_pad = jnp.pad(pos_col, ((0, 0), (0, D_IN - 1)))                  # (3N, D_IN)
    xp = jnp.concatenate([x, pos_pad], axis=0)                           # (4N, D_IN)

    vmem = pl.BlockSpec(memory_space=pltpu.MemorySpace.VMEM)
    args = (xp, w_wide, w_narrow)
    return pl.pallas_call(
        _combined_kernel,
        out_shape=jax.ShapeDtypeStruct((3, 3), jnp.float32),
        in_specs=[vmem] * len(args),
        out_specs=pl.BlockSpec(memory_space=pltpu.MemorySpace.VMEM),
    )(*args)


def reference(x, positions, p):
    s = jax.nn.relu(x @ p["w0"] + p["b0"])
    u = x @ p["wv"]
    v = positions[:, :, None] * u[:, None, :]              # (N, 3, F)
    v1 = jnp.einsum("ncf,fg->ncg", v, p["w1"])
    v2 = jnp.einsum("ncf,fg->ncg", v, p["w2"])
    v2n = jnp.sqrt(jnp.sum(v2 * v2, axis=1) + 1e-8)
    h = jax.nn.silu(s @ p["wg1s"] + v2n @ p["wg1v"] + p["bg1"])
    gate_s = h @ p["wg2s"] + p["bg2s"]
    gate_v = h @ p["wg2v"] + p["bg2v"]
    s_out = gate_s
    v_out = v1 * gate_v[:, None, :]
    sc = (s_out @ p["wso"])[:, 0]
    vec = jnp.einsum("ncf,fo->nc", v_out, p["wvo"])
    M = jnp.einsum("ni,nj->ij", vec, positions)
    return jnp.sum(sc) * jnp.eye(3, dtype=jnp.float32) + 0.5 * (M + M.T)


if __name__ == "__main__":
    key = jax.random.PRNGKey(0)
    kx, kp, kw = jax.random.split(key, 3)
    x = jax.random.normal(kx, (N_ATOMS, D_IN), jnp.float32)
    positions = jax.random.normal(kp, (N_ATOMS, 3), jnp.float32)
    params = init_params(kw)

    dielectric = jax.block_until_ready(combined_model(x, positions, params))
    ref = jax.block_until_ready(reference(x, positions, params))
    np.testing.assert_allclose(np.asarray(dielectric), np.asarray(ref),
                               rtol=2e-2, atol=2e-2)
    print("KERNEL_OK")
</pallas_src>

<mosaic_0001>
module attributes {stable_mosaic.version = 11 : i64} {
  func.func @_combined_kernel(%arg0: memref<64x16xf32, #tpu.memory_space<vmem>>, %arg1: memref<48x128xf32, #tpu.memory_space<vmem>>, %arg2: memref<104x32xf32, #tpu.memory_space<vmem>>, %arg3: memref<3x3xf32, #tpu.memory_space<vmem>>) attributes {dimension_semantics = [], scalar_prefetch = 0 : i64, scratch_operands = 0 : i64, tpu.core_type = #tpu.core_type<tc>} {
    %c0 = arith.constant 0 : index
    %c0_0 = arith.constant 0 : index
    %0 = vector.load %arg0[%c0, %c0_0] : memref<64x16xf32, #tpu.memory_space<vmem>>, vector<16x16xf32>
    %c16 = arith.constant 16 : index
    %c0_1 = arith.constant 0 : index
    %1 = vector.load %arg0[%c16, %c0_1] : memref<64x16xf32, #tpu.memory_space<vmem>>, vector<48x1xf32>
    %c64 = arith.constant 64 : index
    %c0_2 = arith.constant 0 : index
    %2 = vector.load %arg2[%c64, %c0_2] : memref<104x32xf32, #tpu.memory_space<vmem>>, vector<4x32xf32>
    %3 = vector.extract_strided_slice %2 {offsets = [0, 0], sizes = [1, 32], strides = [1, 1]} : vector<4x32xf32> to vector<1x32xf32>
    %4 = vector.extract_strided_slice %2 {offsets = [1, 0], sizes = [1, 32], strides = [1, 1]} : vector<4x32xf32> to vector<1x32xf32>
    %5 = vector.extract_strided_slice %2 {offsets = [2, 0], sizes = [1, 32], strides = [1, 1]} : vector<4x32xf32> to vector<1x32xf32>
    %6 = vector.extract_strided_slice %2 {offsets = [3, 0], sizes = [1, 32], strides = [1, 1]} : vector<4x32xf32> to vector<1x32xf32>
    %c0_3 = arith.constant 0 : index
    %c0_4 = arith.constant 0 : index
    %7 = vector.load %arg1[%c0_3, %c0_4] : memref<48x128xf32, #tpu.memory_space<vmem>>, vector<16x128xf32>
    %cst = arith.constant dense<0.000000e+00> : vector<16x128xf32>
    %8 = tpu.matmul %0, %7, %cst {dimension_numbers = #tpu.dot_dimension_numbers<[1], [0], [0], [1], [0, 0, 1, 1], [], []>} : vector<16x16xf32>, vector<16x128xf32>, vector<16x128xf32> -> vector<16x128xf32>
    %9 = vector.extract_strided_slice %8 {offsets = [0, 0], sizes = [16, 32], strides = [1, 1]} : vector<16x128xf32> to vector<16x32xf32>
    %10 = vector.broadcast %3 : vector<1x32xf32> to vector<16x32xf32>
    %11 = arith.addf %9, %10 : vector<16x32xf32>
    %cst_5 = arith.constant 0.000000e+00 : f32
    %12 = vector.broadcast %cst_5 : f32 to vector<16x32xf32>
    %13 = arith.maximumf %11, %12 : vector<16x32xf32>
    %14 = vector.extract_strided_slice %8 {offsets = [0, 32], sizes = [16, 32], strides = [1, 1]} : vector<16x128xf32> to vector<16x32xf32>
    %15 = tpu.concatenate %14, %14, %14 in 0 : vector<16x32xf32>, vector<16x32xf32>, vector<16x32xf32> -> vector<48x32xf32>
    %16 = vector.broadcast %1 : vector<48x1xf32> to vector<48x32xf32>
    %17 = arith.mulf %16, %15 : vector<48x32xf32>
    %c16_6 = arith.constant 16 : index
    %c0_7 = arith.constant 0 : index
    %18 = vector.load %arg1[%c16_6, %c0_7] : memref<48x128xf32, #tpu.memory_space<vmem>>, vector<32x64xf32>
    %cst_8 = arith.constant dense<0.000000e+00> : vector<48x64xf32>
    %19 = tpu.matmul %17, %18, %cst_8 {dimension_numbers = #tpu.dot_dimension_numbers<[1], [0], [0], [1], [0, 0, 1, 1], [], []>} : vector<48x32xf32>, vector<32x64xf32>, vector<48x64xf32> -> vector<48x64xf32>
    %20 = vector.extract_strided_slice %19 {offsets = [0, 0], sizes = [48, 32], strides = [1, 1]} : vector<48x64xf32> to vector<48x32xf32>
    %21 = vector.extract_strided_slice %19 {offsets = [0, 32], sizes = [48, 32], strides = [1, 1]} : vector<48x64xf32> to vector<48x32xf32>
    %22 = arith.mulf %21, %21 : vector<48x32xf32>
    %23 = vector.extract_strided_slice %22 {offsets = [0, 0], sizes = [16, 32], strides = [1, 1]} : vector<48x32xf32> to vector<16x32xf32>
    %24 = vector.extract_strided_slice %22 {offsets = [16, 0], sizes = [16, 32], strides = [1, 1]} : vector<48x32xf32> to vector<16x32xf32>
    %25 = arith.addf %23, %24 : vector<16x32xf32>
    %26 = vector.extract_strided_slice %22 {offsets = [32, 0], sizes = [16, 32], strides = [1, 1]} : vector<48x32xf32> to vector<16x32xf32>
    %27 = arith.addf %25, %26 : vector<16x32xf32>
    %cst_9 = arith.constant 9.99999993E-9 : f32
    %28 = vector.broadcast %cst_9 : f32 to vector<16x32xf32>
    %29 = arith.addf %27, %28 : vector<16x32xf32>
    %30 = math.sqrt %29 : vector<16x32xf32>
    %31 = tpu.concatenate %13, %30 in 1 : vector<16x32xf32>, vector<16x32xf32> -> vector<16x64xf32>
    %c0_10 = arith.constant 0 : index
    %c0_11 = arith.constant 0 : index
    %32 = vector.load %arg2[%c0_10, %c0_11] : memref<104x32xf32, #tpu.memory_space<vmem>>, vector<64x32xf32>
    %cst_12 = arith.constant dense<0.000000e+00> : vector<16x32xf32>
    %33 = tpu.matmul %31, %32, %cst_12 {dimension_numbers = #tpu.dot_dimension_numbers<[1], [0], [0], [1], [0, 0, 1, 1], [], []>} : vector<16x64xf32>, vector<64x32xf32>, vector<16x32xf32> -> vector<16x32xf32>
    %34 = vector.broadcast %4 : vector<1x32xf32> to vector<16x32xf32>
    %35 = arith.addf %33, %34 : vector<16x32xf32>
    %36 = arith.negf %35 : vector<16x32xf32>
    %37 = math.exp %36 : vector<16x32xf32>
    %cst_13 = arith.constant 1.000000e+00 : f32
    %38 = vector.broadcast %cst_13 : f32 to vector<16x32xf32>
    %39 = arith.addf %38, %37 : vector<16x32xf32>
    %40 = arith.divf %38, %39 : vector<16x32xf32>
    %41 = arith.mulf %35, %40 : vector<16x32xf32>
    %c16_14 = arith.constant 16 : index
    %c64_15 = arith.constant 64 : index
    %42 = vector.load %arg1[%c16_14, %c64_15] : memref<48x128xf32, #tpu.memory_space<vmem>>, vector<32x64xf32>
    %cst_16 = arith.constant dense<0.000000e+00> : vector<16x64xf32>
    %43 = tpu.matmul %41, %42, %cst_16 {dimension_numbers = #tpu.dot_dimension_numbers<[1], [0], [0], [1], [0, 0, 1, 1], [], []>} : vector<16x32xf32>, vector<32x64xf32>, vector<16x64xf32> -> vector<16x64xf32>
    %44 = vector.extract_strided_slice %43 {offsets = [0, 0], sizes = [16, 32], strides = [1, 1]} : vector<16x64xf32> to vector<16x32xf32>
    %45 = vector.broadcast %5 : vector<1x32xf32> to vector<16x32xf32>
    %46 = arith.addf %44, %45 : vector<16x32xf32>
    %47 = vector.extract_strided_slice %43 {offsets = [0, 32], sizes = [16, 32], strides = [1, 1]} : vector<16x64xf32> to vector<16x32xf32>
    %48 = vector.broadcast %6 : vector<1x32xf32> to vector<16x32xf32>
    %49 = arith.addf %47, %48 : vector<16x32xf32>
    %50 = tpu.concatenate %49, %49, %49 in 0 : vector<16x32xf32>, vector<16x32xf32>, vector<16x32xf32> -> vector<48x32xf32>
    %51 = arith.mulf %20, %50 : vector<48x32xf32>
    %52 = tpu.concatenate %46, %51 in 0 : vector<16x32xf32>, vector<48x32xf32> -> vector<64x32xf32>
    %c72 = arith.constant 72 : index
    %c0_17 = arith.constant 0 : index
    %53 = vector.load %arg2[%c72, %c0_17] : memref<104x32xf32, #tpu.memory_space<vmem>>, vector<32x32xf32>
    %cst_18 = arith.constant dense<0.000000e+00> : vector<64x32xf32>
    %54 = tpu.matmul %52, %53, %cst_18 {dimension_numbers = #tpu.dot_dimension_numbers<[1], [0], [0], [1], [0, 0, 1, 1], [], []>} : vector<64x32xf32>, vector<32x32xf32>, vector<64x32xf32> -> vector<64x32xf32>
    %55 = vector.extract_strided_slice %54 {offsets = [0, 0], sizes = [16, 1], strides = [1, 1]} : vector<64x32xf32> to vector<16x1xf32>
    %56 = vector.shape_cast %55 : vector<16x1xf32> to vector<1x16x1xf32>
    %cst_19 = arith.constant dense<0.000000e+00> : vector<1xf32>
    %57 = vector.multi_reduction <add>, %56, %cst_19 [1, 2] : vector<1x16x1xf32> to vector<1xf32>
    %58 = vector.shape_cast %57 : vector<1xf32> to vector<1x1x1xf32>
    %59 = vector.extract %58[0, 0, 0] : f32 from vector<1x1x1xf32>
    %60 = vector.broadcast %59 : f32 to vector<1x1xf32>
    %61 = vector.extract_strided_slice %54 {offsets = [16, 1], sizes = [48, 1], strides = [1, 1]} : vector<64x32xf32> to vector<48x1xf32>
    %62 = vector.extract_strided_slice %61 {offsets = [0, 0], sizes = [16, 1], strides = [1, 1]} : vector<48x1xf32> to vector<16x1xf32>
    %63 = vector.extract_strided_slice %61 {offsets = [16, 0], sizes = [16, 1], strides = [1, 1]} : vector<48x1xf32> to vector<16x1xf32>
    %64 = vector.extract_strided_slice %61 {offsets = [32, 0], sizes = [16, 1], strides = [1, 1]} : vector<48x1xf32> to vector<16x1xf32>
    %65 = tpu.concatenate %62, %63, %64 in 1 : vector<16x1xf32>, vector<16x1xf32>, vector<16x1xf32> -> vector<16x3xf32>
    %66 = vector.extract_strided_slice %1 {offsets = [0, 0], sizes = [16, 1], strides = [1, 1]} : vector<48x1xf32> to vector<16x1xf32>
    %67 = vector.extract_strided_slice %1 {offsets = [16, 0], sizes = [16, 1], strides = [1, 1]} : vector<48x1xf32> to vector<16x1xf32>
    %68 = vector.extract_strided_slice %1 {offsets = [32, 0], sizes = [16, 1], strides = [1, 1]} : vector<48x1xf32> to vector<16x1xf32>
    %69 = tpu.concatenate %66, %67, %68 in 1 : vector<16x1xf32>, vector<16x1xf32>, vector<16x1xf32> -> vector<16x3xf32>
    %cst_20 = arith.constant dense<0.000000e+00> : vector<3x3xf32>
    %70 = tpu.matmul %65, %69, %cst_20 {dimension_numbers = #tpu.dot_dimension_numbers<[0], [0], [1], [1], [0, 1, 1, 1], [], []>} : vector<16x3xf32>, vector<16x3xf32>, vector<3x3xf32> -> vector<3x3xf32>
    %cst_21 = arith.constant dense<0.000000e+00> : vector<3x3xf32>
    %71 = tpu.matmul %69, %65, %cst_21 {dimension_numbers = #tpu.dot_dimension_numbers<[0], [0], [1], [1], [0, 1, 1, 1], [], []>} : vector<16x3xf32>, vector<16x3xf32>, vector<3x3xf32> -> vector<3x3xf32>
    %72 = tpu.iota {dimensions = array<i32: 0>} : vector<3x3xi32>
    %73 = tpu.iota {dimensions = array<i32: 1>} : vector<3x3xi32>
    %74 = arith.cmpi eq, %72, %73 : vector<3x3xi32>
    %75 = arith.extui %74 : vector<3x3xi1> to vector<3x3xi32>
    %76 = arith.sitofp %75 : vector<3x3xi32> to vector<3x3xf32>
    %77 = arith.addf %70, %71 : vector<3x3xf32>
    %cst_22 = arith.constant 5.000000e-01 : f32
    %78 = vector.broadcast %cst_22 : f32 to vector<3x3xf32>
    %79 = arith.mulf %78, %77 : vector<3x3xf32>
    %80 = vector.broadcast %60 : vector<1x1xf32> to vector<3x3xf32>
    %81 = arith.mulf %80, %76 : vector<3x3xf32>
    %82 = arith.addf %79, %81 : vector<3x3xf32>
    %c0_23 = arith.constant 0 : index
    %c0_24 = arith.constant 0 : index
    %83 = vector.load %arg3[%c0_23, %c0_24] : memref<3x3xf32, #tpu.memory_space<vmem>>, vector<3x3xf32>
    tpu.vector_store %arg3[%c0_23, %c0_24], %82 {strides = array<i32>} : memref<3x3xf32, #tpu.memory_space<vmem>>, vector<3x3xf32>,
    return
  }
}

</mosaic_0001>

<llo_original>
// kernel: tpu_custom_call.1
$region0: #{tpu_custom_call.1}
  #allocation0 [shape = 'u32[]', space=smem, size = 0x4, offset = 0x4, fixed_abs, tag = 'smem constant byte address 0x4 - core index']
  #allocation1 [shape = 'u32[144,128]{1,0:T(1,128)}', space=vmem, size = 0x12000, scoped, tag = 'internal scratch']
  %s0 = inlined_call_operand.vmem [shape: f32[64,16], index: 0, kind: input, shape index: {}]
  %s1 = inlined_call_operand.vmem [shape: f32[48,128], index: 1, kind: input, shape index: {}]
  %s2 = inlined_call_operand.vmem [shape: f32[104,32], index: 2, kind: input, shape index: {}]
  %s3 = inlined_call_operand.hbm [shape: f32[3,3], index: 3, kind: output, shape index: {}]
  %s4 = sld [smem:[#allocation0]]
  $region22: #{tpu_custom_call.1} parent=0
    _
  %s6 = ssub.s32 1, %s4
  %s7 = scalar_select 0, %s6, %s4
  $region1: #{tpu_custom_call.1} parent=0
    #allocation2 [shape = 'u8[2048]{0}', space=vmem, size = 0x800, scoped, tag = 'output window, operand 0, single buffered']
    #allocation3 [shape = 's32[1]{0}', space=sflag, size = 0x4, scoped, tag = 'scoped memory for tpu_custom_call.1']
    %8 = vsyncpa [#allocation3], 0
    // Predicated region
    $region2: #{tpu_custom_call.1} parent=1 // pred_check
      _
    $region3: #{tpu_custom_call.1} parent=1 // pred_check_branch
      %10 = sbr.rel (0) target = $region5
    $region4: #{tpu_custom_call.1} parent=1 // pred_region
      _
    $region5: #{tpu_custom_call.1} parent=1 // pred_fallthru
      _
    // Predicated region
    $region6: #{tpu_custom_call.1} parent=1 // pred_check
      _
    $region7: #{tpu_custom_call.1} parent=1 // pred_check_branch
      %12 = sbr.rel (0) target = $region9
    $region8: #{tpu_custom_call.1} parent=1 // pred_region
      _
    $region9: #{tpu_custom_call.1} parent=1 // pred_fallthru
      _
    // Predicated region
    $region10: #{tpu_custom_call.1} parent=1 // pred_check
      _
    $region11: #{tpu_custom_call.1} parent=1 // pred_check_branch
      %14 = sbr.rel (0) target = $region13
    $region12: #{tpu_custom_call.1} parent=1 // pred_region
      _
    $region13: #{tpu_custom_call.1} parent=1 // pred_fallthru
      _
    %v15 = vld [vmem:[%s0] sm:$0xff]
    %v16 = vld [vmem:[%s0 + $0x8] sm:$0xff]
    %v17 = vld [vmem:[%s0 + $0x10] sm:$0xff]
    %v18 = vld [vmem:[%s0 + $0x18] sm:$0xff]
    %v19 = vld [vmem:[%s0 + $0x20] sm:$0xff]
    %v20 = vld [vmem:[%s0 + $0x28] sm:$0xff]
    %v21 = vld [vmem:[%s0 + $0x30] sm:$0xff]
    %v22 = vld [vmem:[%s0 + $0x38] sm:$0xff]
    %v23 = vld [vmem:[%s2 + $0x40] sm:$0xf]
    %v24 = vld [vmem:[%s1] sm:$0xff]
    %v25 = vld [vmem:[%s1 + $0x8] sm:$0xff]
    %vm26 = vcmask 130048
    %v28 = vsel %vm26, %v15, 0
    %v31 = vsel %vm26, %v16, 0
    %33 = vmatprep.subr.mxu0 0.0
    %34 = vmatpush1.msra.mxu0 0.0
    %35 = vmatprep.subr.mxu0 0.0
    %36 = vmatpush1.msra.mxu0 0.0
    %37 = vmatprep.subr.mxu0 0.0
    %38 = vmatpush1.msra.mxu0 0.0
    %39 = vmatprep.subr.mxu0 0.0
    %40 = vmatpush1.msra.mxu0 0.0
    %41 = vmatprep.subr.mxu0 0.0
    %42 = vmatpush1.msra.mxu0 0.0
    %43 = vmatprep.subr.mxu0 0.0
    %44 = vmatpush1.msra.mxu0 0.0
    %45 = vmatprep.subr.mxu0 0.0
    %46 = vmatpush1.msra.mxu0 0.0
    %47 = vmatprep.subr.mxu0 0.0
    %48 = vmatpush1.msra.mxu0 0.0
    %49 = vmatprep.subr.mxu0 0.0
    %50 = vmatpush1.msra.mxu0 0.0
    %51 = vmatprep.subr.mxu0 0.0
    %52 = vmatpush1.msra.mxu0 0.0
    %53 = vmatprep.subr.mxu0 0.0
    %54 = vmatpush1.msra.mxu0 0.0
    %55 = vmatprep.subr.mxu0 0.0
    %56 = vmatpush1.msra.mxu0 0.0
    %57 = vmatprep.subr.mxu0 0.0
    %58 = vmatpush1.msra.mxu0 0.0
    %59 = vmatprep.subr.mxu0 0.0
    %60 = vmatpush1.msra.mxu0 0.0
    %61 = vmatprep.subr.mxu0 0.0
    %62 = vmatpush1.msra.mxu0 %v25
    %63 = vmatprep.subr.mxu0 0.0
    %64 = vmatpush1.msra.mxu0 %v24
    %65 = vmatprep.subr.mxu0 0.0
    %66 = vmatpush2.msra.mxu0 0.0
    %67 = vmatprep.subr.mxu0 0.0
    %68 = vmatpush2.msra.mxu0 0.0
    %69 = vmatprep.subr.mxu0 0.0
    %70 = vmatpush2.msra.mxu0 0.0
    %71 = vmatprep.subr.mxu0 0.0
    %72 = vmatpush2.msra.mxu0 0.0
    %73 = vmatprep.subr.mxu0 0.0
    %74 = vmatpush2.msra.mxu0 0.0
    %75 = vmatprep.subr.mxu0 0.0
    %76 = vmatpush2.msra.mxu0 0.0
    %77 = vmatprep.subr.mxu0 0.0
    %78 = vmatpush2.msra.mxu0 0.0
    %79 = vmatprep.subr.mxu0 0.0
    %80 = vmatpush2.msra.mxu0 0.0
    %81 = vmatprep.subr.mxu0 0.0
    %82 = vmatpush2.msra.mxu0 0.0
    %83 = vmatprep.subr.mxu0 0.0
    %84 = vmatpush2.msra.mxu0 0.0
    %85 = vmatprep.subr.mxu0 0.0
    %86 = vmatpush2.msra.mxu0 0.0
    %87 = vmatprep.subr.mxu0 0.0
    %88 = vmatpush2.msra.mxu0 0.0
    %89 = vmatprep.subr.mxu0 0.0
    %90 = vmatpush2.msra.mxu0 0.0
    %91 = vmatprep.subr.mxu0 0.0
    %92 = vmatpush2.msra.mxu0 0.0
    %93 = vmatprep.subr.mxu0 0.0
    %94 = vmatpush2.msra.mxu0 0.0
    %95 = vmatprep.subr.mxu0 0.0
    %96 = vmatpush2.msra.mxu0 0.0
    %97 = vmatprep.mubr.f32.mxu0 0.0
    %98 = vmatmul.mubr.f32.gmra.mxu0 %v28
    %v99 = vpop.f32.mrf.mxu0
    %v100 = vadd.f32 0.0, %v99
    %v101 = vpop.f32.mrf.mxu0
    %102 = vmatprep.mubr.f32.mxu0 0.0
    %103 = vmatmul.mubr.f32.gmra.mxu0 %v31
    %v104 = vpop.f32.mrf.mxu0
    %v105 = vadd.f32 0.0, %v104
    %v106 = vpop.f32.mrf.mxu0
    %107 = vdwg.mxu0
    %v108 = vlaneseq
    %v109 = vshrl.u32 %v108, 7
    %v110 = vsub.s32 0, %v109
    %v111 = vrot.slane %v23, %v110
    %v112 = vadd.f32 %v100, %v111
    %v113 = vadd.f32 %v105, %v111
    %v114 = vmax.f32 %v112, 0.0
    %v115 = vmax.f32 %v113, 0.0
    %117 = vset.pattern.permute.xlu0 0
    %118 = vperm.xlu0 %117, %v17
    %v119 = vpop.permute.xlu0 %118
    %122 = vset.pattern.permute.xlu0 0
    %123 = vperm.xlu0 %122, %v18
    %v124 = vpop.permute.xlu0 %123
    %127 = vset.pattern.permute.xlu0 0
    %128 = vperm.xlu0 %127, %v19
    %v129 = vpop.permute.xlu0 %128
    %132 = vset.pattern.permute.xlu0 0
    %133 = vperm.xlu0 %132, %v20
    %v134 = vpop.permute.xlu0 %133
    %137 = vset.pattern.permute.xlu0 0
    %138 = vperm.xlu0 %137, %v21
    %v139 = vpop.permute.xlu0 %138
    %142 = vset.pattern.permute.xlu0 0
    %143 = vperm.xlu0 %142, %v22
    %v144 = vpop.permute.xlu0 %143
    %v146 = vmul.f32 %v119, %v100
    %v147 = vmul.f32 %v124, %v105
    %v148 = vmul.f32 %v129, %v100
    %v149 = vmul.f32 %v134, %v105
    %v150 = vmul.f32 %v139, %v100
    %v151 = vmul.f32 %v144, %v105
    %v152 = vld [vmem:[%s1 + $0x10] sm:$0xff]
    %v153 = vld [vmem:[%s1 + $0x18] sm:$0xff]
    %v154 = vld [vmem:[%s1 + $0x20] sm:$0xff]
    %v155 = vld [vmem:[%s1 + $0x28] sm:$0xff]
    %162 = vrot.lane.b32.xlu0 %v146, 96
    %v163 = vpop.permute.xlu0 %162
    %164 = vrot.lane.b32.xlu0 %v147, 96
    %v165 = vpop.permute.xlu0 %164
    %166 = vrot.lane.b32.xlu0 %v148, 96
    %v167 = vpop.permute.xlu0 %166
    %168 = vrot.lane.b32.xlu0 %v149, 96
    %v169 = vpop.permute.xlu0 %168
    %170 = vrot.lane.b32.xlu0 %v150, 96
    %v171 = vpop.permute.xlu0 %170
    %172 = vrot.lane.b32.xlu0 %v151, 96
    %v173 = vpop.permute.xlu0 %172
    %vm174 = vcmask 261120
    %v175 = vsel %vm174, %v163, 0
    %v177 = vsel %vm174, %v165, 0
    %v179 = vsel %vm174, %v167, 0
    %v181 = vsel %vm174, %v169, 0
    %v183 = vsel %vm174, %v171, 0
    %v185 = vsel %vm174, %v173, 0
    %187 = vmatprep.subr.mxu0 0.0
    %188 = vmatpush1.msra.mxu0 0.0
    %189 = vmatprep.subr.mxu0 0.0
    %190 = vmatpush1.msra.mxu0 0.0
    %191 = vmatprep.subr.mxu0 0.0
    %192 = vmatpush1.msra.mxu0 0.0
    %193 = vmatprep.subr.mxu0 0.0
    %194 = vmatpush1.msra.mxu0 0.0
    %195 = vmatprep.subr.mxu0 0.0
    %196 = vmatpush1.msra.mxu0 0.0
    %197 = vmatprep.subr.mxu0 0.0
    %198 = vmatpush1.msra.mxu0 0.0
    %199 = vmatprep.subr.mxu0 0.0
    %200 = vmatpush1.msra.mxu0 0.0
    %201 = vmatprep.subr.mxu0 0.0
    %202 = vmatpush1.msra.mxu0 0.0
    %203 = vmatprep.subr.mxu0 0.0
    %204 = vmatpush1.msra.mxu0 0.0
    %205 = vmatprep.subr.mxu0 0.0
    %206 = vmatpush1.msra.mxu0 0.0
    %207 = vmatprep.subr.mxu0 0.0
    %208 = vmatpush1.msra.mxu0 0.0
    %209 = vmatprep.subr.mxu0 0.0
    %210 = vmatpush1.msra.mxu0 0.0
    %211 = vmatprep.subr.mxu0 0.0
    %212 = vmatpush1.msra.mxu0 %v155
    %213 = vmatprep.subr.mxu0 0.0
    %214 = vmatpush1.msra.mxu0 %v154
    %215 = vmatprep.subr.mxu0 0.0
    %216 = vmatpush1.msra.mxu0 %v153
    %217 = vmatprep.subr.mxu0 0.0
    %218 = vmatpush1.msra.mxu0 %v152
    %219 = vmatprep.subr.mxu0 0.0
    %220 = vmatpush2.msra.mxu0 0.0
    %221 = vmatprep.subr.mxu0 0.0
    %222 = vmatpush2.msra.mxu0 0.0
    %223 = vmatprep.subr.mxu0 0.0
    %224 = vmatpush2.msra.mxu0 0.0
    %225 = vmatprep.subr.mxu0 0.0
    %226 = vmatpush2.msra.mxu0 0.0
    %227 = vmatprep.subr.mxu0 0.0
    %228 = vmatpush2.msra.mxu0 0.0
    %229 = vmatprep.subr.mxu0 0.0
    %230 = vmatpush2.msra.mxu0 0.0
    %231 = vmatprep.subr.mxu0 0.0
    %232 = vmatpush2.msra.mxu0 0.0
    %233 = vmatprep.subr.mxu0 0.0
    %234 = vmatpush2.msra.mxu0 0.0
    %235 = vmatprep.subr.mxu0 0.0
    %236 = vmatpush2.msra.mxu0 0.0
    %237 = vmatprep.subr.mxu0 0.0
    %238 = vmatpush2.msra.mxu0 0.0
    %239 = vmatprep.subr.mxu0 0.0
    %240 = vmatpush2.msra.mxu0 0.0
    %241 = vmatprep.subr.mxu0 0.0
    %242 = vmatpush2.msra.mxu0 0.0
    %243 = vmatprep.subr.mxu0 0.0
    %244 = vmatpush2.msra.mxu0 0.0
    %245 = vmatprep.subr.mxu0 0.0
    %246 = vmatpush2.msra.mxu0 0.0
    %247 = vmatprep.subr.mxu0 0.0
    %248 = vmatpush2.msra.mxu0 0.0
    %249 = vmatprep.subr.mxu0 0.0
    %250 = vmatpush2.msra.mxu0 0.0
    %251 = vmatprep.mubr.f32.mxu0 0.0
    %252 = vmatmul.mubr.f32.gmra.mxu0 %v175
    %v253 = vpop.f32.mrf.mxu0
    %v254 = vadd.f32 0.0, %v253
    %v255 = vpop.f32.mrf.mxu0
    %256 = vmatprep.mubr.f32.mxu0 0.0
    %257 = vmatmul.mubr.f32.gmra.mxu0 %v177
    %v258 = vpop.f32.mrf.mxu0
    %v259 = vadd.f32 0.0, %v258
    %v260 = vpop.f32.mrf.mxu0
    %261 = vmatprep.mubr.f32.mxu0 0.0
    %262 = vmatmul.mubr.f32.gmra.mxu0 %v179
    %v263 = vpop.f32.mrf.mxu0
    %v264 = vadd.f32 0.0, %v263
    %v265 = vpop.f32.mrf.mxu0
    %266 = vmatprep.mubr.f32.mxu0 0.0
    %267 = vmatmul.mubr.f32.gmra.mxu0 %v181
    %v268 = vpop.f32.mrf.mxu0
    %v269 = vadd.f32 0.0, %v268
    %v270 = vpop.f32.mrf.mxu0
    %271 = vmatprep.mubr.f32.mxu0 0.0
    %272 = vmatmul.mubr.f32.gmra.mxu0 %v183
    %v273 = vpop.f32.mrf.mxu0
    %v274 = vadd.f32 0.0, %v273
    %v275 = vpop.f32.mrf.mxu0
    %276 = vmatprep.mubr.f32.mxu0 0.0
    %277 = vmatmul.mubr.f32.gmra.mxu0 %v185
    %v278 = vpop.f32.mrf.mxu0
    %v279 = vadd.f32 0.0, %v278
    %v280 = vpop.f32.mrf.mxu0
    %281 = vdwg.mxu0
    %v282 = vmul.f32 %v254, %v254
    %v283 = vmul.f32 %v259, %v259
    %v284 = vmul.f32 %v264, %v264
    %v285 = vmul.f32 %v269, %v269
    %v286 = vmul.f32 %v274, %v274
    %v287 = vmul.f32 %v279, %v279
    %v288 = vadd.f32 %v282, %v284
    %v289 = vadd.f32 %v283, %v285
    %v290 = vadd.f32 %v288, %v286
    %v291 = vadd.f32 %v289, %v287
    %v292 = vadd.f32 %v290, 1e-08
    %v293 = vadd.f32 %v291, 1e-08
    %v294 = vrsqrt.pop %v292
    %v295 = vmul.f32 %v292, %v294
    %vm296 = vcmp.eq.f32.partialorder %v292, inf
    %v297 = vsel %vm296, %v292, %v295
    %vm298 = vcmp.eq.f32.partialorder %v292, 0.0
    %v299 = vand.u32 %v292, 2147483648
    %v300 = vsel %vm298, %v299, %v297
    %v301 = vrsqrt.pop %v293
    %v302 = vmul.f32 %v293, %v301
    %vm303 = vcmp.eq.f32.partialorder %v293, inf
    %v304 = vsel %vm303, %v293, %v302
    %vm305 = vcmp.eq.f32.partialorder %v293, 0.0
    %v306 = vand.u32 %v293, 2147483648
    %v307 = vsel %vm305, %v306, %v304
    %v308 = vsel %vm174, %v114, %v300
    %v309 = vsel %vm174, %v115, %v307
    %v310 = vld [vmem:[%s2] sm:$0xff]
    %v311 = vld [vmem:[%s2 + $0x8] sm:$0xff]
    %v312 = vld [vmem:[%s2 + $0x10] sm:$0xff]
    %v313 = vld [vmem:[%s2 + $0x18] sm:$0xff]
    %v314 = vld [vmem:[%s2 + $0x20] sm:$0xff]
    %v315 = vld [vmem:[%s2 + $0x28] sm:$0xff]
    %v316 = vld [vmem:[%s2 + $0x30] sm:$0xff]
    %v317 = vld [vmem:[%s2 + $0x38] sm:$0xff]
    %v318 = vlaneseq
    %v319 = vshrl.u32 %v318, 7
    %v320 = vsub.s32 1, %v319
    %v321 = vrot.slane %v23, %v320
    %vm322 = vcmask 523264
    %v324 = vsel %vm322, %v308, 0
    %v327 = vsel %vm322, %v309, 0
    %329 = vmatprep.subr.mxu0 0.0
    %330 = vmatpush1.msra.mxu0 0.0
    %331 = vmatprep.subr.mxu0 0.0
    %332 = vmatpush1.msra.mxu0 0.0
    %333 = vmatprep.subr.mxu0 0.0
    %334 = vmatpush1.msra.mxu0 0.0
    %335 = vmatprep.subr.mxu0 0.0
    %336 = vmatpush1.msra.mxu0 0.0
    %337 = vmatprep.subr.mxu0 0.0
    %338 = vmatpush1.msra.mxu0 0.0
    %339 = vmatprep.subr.mxu0 0.0
    %340 = vmatpush1.msra.mxu0 0.0
    %341 = vmatprep.subr.mxu0 0.0
    %342 = vmatpush1.msra.mxu0 0.0
    %343 = vmatprep.subr.mxu0 0.0
    %344 = vmatpush1.msra.mxu0 0.0
    %345 = vmatprep.subr.mxu0 0.0
    %346 = vmatpush1.msra.mxu0 %v317
    %347 = vmatprep.subr.mxu0 0.0
    %348 = vmatpush1.msra.mxu0 %v316
    %349 = vmatprep.subr.mxu0 0.0
    %350 = vmatpush1.msra.mxu0 %v315
    %351 = vmatprep.subr.mxu0 0.0
    %352 = vmatpush1.msra.mxu0 %v314
    %353 = vmatprep.subr.mxu0 0.0
    %354 = vmatpush1.msra.mxu0 %v313
    %355 = vmatprep.subr.mxu0 0.0
    %356 = vmatpush1.msra.mxu0 %v312
    %357 = vmatprep.subr.mxu0 0.0
    %358 = vmatpush1.msra.mxu0 %v311
    %359 = vmatprep.subr.mxu0 0.0
    %360 = vmatpush1.msra.mxu0 %v310
    %361 = vmatprep.subr.mxu0 0.0
    %362 = vmatpush2.msra.mxu0 0.0
    %363 = vmatprep.subr.mxu0 0.0
    %364 = vmatpush2.msra.mxu0 0.0
    %365 = vmatprep.subr.mxu0 0.0
    %366 = vmatpush2.msra.mxu0 0.0
    %367 = vmatprep.subr.mxu0 0.0
    %368 = vmatpush2.msra.mxu0 0.0
    %369 = vmatprep.subr.mxu0 0.0
    %370 = vmatpush2.msra.mxu0 0.0
    %371 = vmatprep.subr.mxu0 0.0
    %372 = vmatpush2.msra.mxu0 0.0
    %373 = vmatprep.subr.mxu0 0.0
    %374 = vmatpush2.msra.mxu0 0.0
    %375 = vmatprep.subr.mxu0 0.0
    %376 = vmatpush2.msra.mxu0 0.0
    %377 = vmatprep.subr.mxu0 0.0
    %378 = vmatpush2.msra.mxu0 0.0
    %379 = vmatprep.subr.mxu0 0.0
    %380 = vmatpush2.msra.mxu0 0.0
    %381 = vmatprep.subr.mxu0 0.0
    %382 = vmatpush2.msra.mxu0 0.0
    %383 = vmatprep.subr.mxu0 0.0
    %384 = vmatpush2.msra.mxu0 0.0
    %385 = vmatprep.subr.mxu0 0.0
    %386 = vmatpush2.msra.mxu0 0.0
    %387 = vmatprep.subr.mxu0 0.0
    %388 = vmatpush2.msra.mxu0 0.0
    %389 = vmatprep.subr.mxu0 0.0
    %390 = vmatpush2.msra.mxu0 0.0
    %391 = vmatprep.subr.mxu0 0.0
    %392 = vmatpush2.msra.mxu0 0.0
    %393 = vmatprep.mubr.f32.mxu0 0.0
    %394 = vmatmul.mubr.f32.gmra.mxu0 %v324
    %v395 = vpop.f32.mrf.mxu0
    %v396 = vadd.f32 %v321, %v395
    %v397 = vpop.f32.mrf.mxu0
    %398 = vmatprep.mubr.f32.mxu0 0.0
    %399 = vmatmul.mubr.f32.gmra.mxu0 %v327
    %v400 = vpop.f32.mrf.mxu0
    %v401 = vadd.f32 %v321, %v400
    %v402 = vpop.f32.mrf.mxu0
    %403 = vdwg.mxu0
    %v404 = vxor.u32 %v396, 2147483648
    %v405 = vxor.u32 %v401, 2147483648
    %v406 = vmul.f32 %v404, 1.442695
    %v407 = vpow.pop %v406
    %v408 = vmul.f32 %v405, 1.442695
    %v409 = vpow.pop %v408
    %v410 = vadd.f32 %v407, 1.0
    %v411 = vadd.f32 %v409, 1.0
    %v412 = vrcp.pop %v410
    %v413 = vmul.f32 1.0, %v412
    %v414 = vrcp.pop %v411
    %v415 = vmul.f32 1.0, %v414
    %v416 = vmul.f32 %v396, %v413
    %v417 = vmul.f32 %v401, %v415
    %422 = vrot.lane.b32.xlu0 %v152, 64
    %v423 = vpop.permute.xlu0 %422
    %424 = vrot.lane.b32.xlu0 %v153, 64
    %v425 = vpop.permute.xlu0 %424
    %426 = vrot.lane.b32.xlu0 %v154, 64
    %v427 = vpop.permute.xlu0 %426
    %428 = vrot.lane.b32.xlu0 %v155, 64
    %v429 = vpop.permute.xlu0 %428
    %v435 = vsel %vm174, %v416, 0
    %v438 = vsel %vm174, %v417, 0
    %440 = vmatprep.subr.mxu0 0.0
    %441 = vmatpush1.msra.mxu0 0.0
    %442 = vmatprep.subr.mxu0 0.0
    %443 = vmatpush1.msra.mxu0 0.0
    %444 = vmatprep.subr.mxu0 0.0
    %445 = vmatpush1.msra.mxu0 0.0
    %446 = vmatprep.subr.mxu0 0.0
    %447 = vmatpush1.msra.mxu0 0.0
    %448 = vmatprep.subr.mxu0 0.0
    %449 = vmatpush1.msra.mxu0 0.0
    %450 = vmatprep.subr.mxu0 0.0
    %451 = vmatpush1.msra.mxu0 0.0
    %452 = vmatprep.subr.mxu0 0.0
    %453 = vmatpush1.msra.mxu0 0.0
    %454 = vmatprep.subr.mxu0 0.0
    %455 = vmatpush1.msra.mxu0 0.0
    %456 = vmatprep.subr.mxu0 0.0
    %457 = vmatpush1.msra.mxu0 0.0
    %458 = vmatprep.subr.mxu0 0.0
    %459 = vmatpush1.msra.mxu0 0.0
    %460 = vmatprep.subr.mxu0 0.0
    %461 = vmatpush1.msra.mxu0 0.0
    %462 = vmatprep.subr.mxu0 0.0
    %463 = vmatpush1.msra.mxu0 0.0
    %464 = vmatprep.subr.mxu0 0.0
    %465 = vmatpush1.msra.mxu0 %v429
    %466 = vmatprep.subr.mxu0 0.0
    %467 = vmatpush1.msra.mxu0 %v427
    %468 = vmatprep.subr.mxu0 0.0
    %469 = vmatpush1.msra.mxu0 %v425
    %470 = vmatprep.subr.mxu0 0.0
    %471 = vmatpush1.msra.mxu0 %v423
    %472 = vmatprep.subr.mxu0 0.0
    %473 = vmatpush2.msra.mxu0 0.0
    %474 = vmatprep.subr.mxu0 0.0
    %475 = vmatpush2.msra.mxu0 0.0
    %476 = vmatprep.subr.mxu0 0.0
    %477 = vmatpush2.msra.mxu0 0.0
    %478 = vmatprep.subr.mxu0 0.0
    %479 = vmatpush2.msra.mxu0 0.0
    %480 = vmatprep.subr.mxu0 0.0
    %481 = vmatpush2.msra.mxu0 0.0
    %482 = vmatprep.subr.mxu0 0.0
    %483 = vmatpush2.msra.mxu0 0.0
    %484 = vmatprep.subr.mxu0 0.0
    %485 = vmatpush2.msra.mxu0 0.0
    %486 = vmatprep.subr.mxu0 0.0
    %487 = vmatpush2.msra.mxu0 0.0
    %488 = vmatprep.subr.mxu0 0.0
    %489 = vmatpush2.msra.mxu0 0.0
    %490 = vmatprep.subr.mxu0 0.0
    %491 = vmatpush2.msra.mxu0 0.0
    %492 = vmatprep.subr.mxu0 0.0
    %493 = vmatpush2.msra.mxu0 0.0
    %494 = vmatprep.subr.mxu0 0.0
    %495 = vmatpush2.msra.mxu0 0.0
    %496 = vmatprep.subr.mxu0 0.0
    %497 = vmatpush2.msra.mxu0 0.0
    %498 = vmatprep.subr.mxu0 0.0
    %499 = vmatpush2.msra.mxu0 0.0
    %500 = vmatprep.subr.mxu0 0.0
    %501 = vmatpush2.msra.mxu0 0.0
    %502 = vmatprep.subr.mxu0 0.0
    %503 = vmatpush2.msra.mxu0 0.0
    %504 = vmatprep.mubr.f32.mxu0 0.0
    %505 = vmatmul.mubr.f32.gmra.mxu0 %v435
    %v506 = vpop.f32.mrf.mxu0
    %v507 = vadd.f32 0.0, %v506
    %v508 = vpop.f32.mrf.mxu0
    %509 = vmatprep.mubr.f32.mxu0 0.0
    %510 = vmatmul.mubr.f32.gmra.mxu0 %v438
    %v511 = vpop.f32.mrf.mxu0
    %v512 = vadd.f32 0.0, %v511
    %v513 = vpop.f32.mrf.mxu0
    %514 = vdwg.mxu0
    %v515 = vlaneseq
    %v516 = vshrl.u32 %v515, 7
    %v517 = vsub.s32 2, %v516
    %v518 = vrot.slane %v23, %v517
    %v519 = vadd.f32 %v507, %v518
    %v520 = vadd.f32 %v512, %v518
    %v521 = vlaneseq
    %v522 = vshrl.u32 %v521, 7
    %v523 = vsub.s32 3, %v522
    %v524 = vrot.slane %v23, %v523
    %526 = vrot.lane.b32.xlu0 %v524, 32
    %v527 = vpop.permute.xlu0 %526
    %v529 = vadd.f32 %v507, %v527
    %v530 = vadd.f32 %v512, %v527
    %533 = vrot.lane.b32.xlu0 %v529, 96
    %v534 = vpop.permute.xlu0 %533
    %535 = vrot.lane.b32.xlu0 %v530, 96
    %v536 = vpop.permute.xlu0 %535
    %v539 = vmul.f32 %v254, %v534
    %v540 = vmul.f32 %v259, %v536
    %v541 = vmul.f32 %v264, %v534
    %v542 = vmul.f32 %v269, %v536
    %v543 = vmul.f32 %v274, %v534
    %v544 = vmul.f32 %v279, %v536
    %v545 = vld [vmem:[%s2 + $0x48] sm:$0xff]
    %v546 = vld [vmem:[%s2 + $0x50] sm:$0xff]
    %v547 = vld [vmem:[%s2 + $0x58] sm:$0xff]
    %v548 = vld [vmem:[%s2 + $0x60] sm:$0xff]
    %v550 = vsel %vm174, %v519, 0
    %v553 = vsel %vm174, %v520, 0
    %v556 = vsel %vm174, %v539, 0
    %v559 = vsel %vm174, %v540, 0
    %v562 = vsel %vm174, %v541, 0
    %v565 = vsel %vm174, %v542, 0
    %v568 = vsel %vm174, %v543, 0
    %v571 = vsel %vm174, %v544, 0
    %573 = vmatprep.subr.mxu0 0.0
    %574 = vmatpush1.msra.mxu0 0.0
    %575 = vmatprep.subr.mxu0 0.0
    %576 = vmatpush1.msra.mxu0 0.0
    %577 = vmatprep.subr.mxu0 0.0
    %578 = vmatpush1.msra.mxu0 0.0
    %579 = vmatprep.subr.mxu0 0.0
    %580 = vmatpush1.msra.mxu0 0.0
    %581 = vmatprep.subr.mxu0 0.0
    %582 = vmatpush1.msra.mxu0 0.0
    %583 = vmatprep.subr.mxu0 0.0
    %584 = vmatpush1.msra.mxu0 0.0
    %585 = vmatprep.subr.mxu0 0.0
    %586 = vmatpush1.msra.mxu0 0.0
    %587 = vmatprep.subr.mxu0 0.0
    %588 = vmatpush1.msra.mxu0 0.0
    %589 = vmatprep.subr.mxu0 0.0
    %590 = vmatpush1.msra.mxu0 0.0
    %591 = vmatprep.subr.mxu0 0.0
    %592 = vmatpush1.msra.mxu0 0.0
    %593 = vmatprep.subr.mxu0 0.0
    %594 = vmatpush1.msra.mxu0 0.0
    %595 = vmatprep.subr.mxu0 0.0
    %596 = vmatpush1.msra.mxu0 0.0
    %597 = vmatprep.subr.mxu0 0.0
    %598 = vmatpush1.msra.mxu0 %v548
    %599 = vmatprep.subr.mxu0 0.0
    %600 = vmatpush1.msra.mxu0 %v547
    %601 = vmatprep.subr.mxu0 0.0
    %602 = vmatpush1.msra.mxu0 %v546
    %603 = vmatprep.subr.mxu0 0.0
    %604 = vmatpush1.msra.mxu0 %v545
    %605 = vmatprep.subr.mxu0 0.0
    %606 = vmatpush2.msra.mxu0 0.0
    %607 = vmatprep.subr.mxu0 0.0
    %608 = vmatpush2.msra.mxu0 0.0
    %609 = vmatprep.subr.mxu0 0.0
    %610 = vmatpush2.msra.mxu0 0.0
    %611 = vmatprep.subr.mxu0 0.0
    %612 = vmatpush2.msra.mxu0 0.0
    %613 = vmatprep.subr.mxu0 0.0
    %614 = vmatpush2.msra.mxu0 0.0
    %615 = vmatprep.subr.mxu0 0.0
    %616 = vmatpush2.msra.mxu0 0.0
    %617 = vmatprep.subr.mxu0 0.0
    %618 = vmatpush2.msra.mxu0 0.0
    %619 = vmatprep.subr.mxu0 0.0
    %620 = vmatpush2.msra.mxu0 0.0
    %621 = vmatprep.subr.mxu0 0.0
    %622 = vmatpush2.msra.mxu0 0.0
    %623 = vmatprep.subr.mxu0 0.0
    %624 = vmatpush2.msra.mxu0 0.0
    %625 = vmatprep.subr.mxu0 0.0
    %626 = vmatpush2.msra.mxu0 0.0
    %627 = vmatprep.subr.mxu0 0.0
    %628 = vmatpush2.msra.mxu0 0.0
    %629 = vmatprep.subr.mxu0 0.0
    %630 = vmatpush2.msra.mxu0 0.0
    %631 = vmatprep.subr.mxu0 0.0
    %632 = vmatpush2.msra.mxu0 0.0
    %633 = vmatprep.subr.mxu0 0.0
    %634 = vmatpush2.msra.mxu0 0.0
    %635 = vmatprep.subr.mxu0 0.0
    %636 = vmatpush2.msra.mxu0 0.0
    %637 = vmatprep.mubr.f32.mxu0 0.0
    %638 = vmatmul.mubr.f32.gmra.mxu0 %v550
    %v639 = vpop.f32.mrf.mxu0
    %v640 = vadd.f32 0.0, %v639
    %v641 = vpop.f32.mrf.mxu0
    %642 = vmatprep.mubr.f32.mxu0 0.0
    %643 = vmatmul.mubr.f32.gmra.mxu0 %v553
    %v644 = vpop.f32.mrf.mxu0
    %v645 = vadd.f32 0.0, %v644
    %v646 = vpop.f32.mrf.mxu0
    %647 = vmatprep.mubr.f32.mxu0 0.0
    %648 = vmatmul.mubr.f32.gmra.mxu0 %v556
    %v649 = vpop.f32.mrf.mxu0
    %v650 = vadd.f32 0.0, %v649
    %v651 = vpop.f32.mrf.mxu0
    %652 = vmatprep.mubr.f32.mxu0 0.0
    %653 = vmatmul.mubr.f32.gmra.mxu0 %v559
    %v654 = vpop.f32.mrf.mxu0
    %v655 = vadd.f32 0.0, %v654
    %v656 = vpop.f32.mrf.mxu0
    %657 = vmatprep.mubr.f32.mxu0 0.0
    %658 = vmatmul.mubr.f32.gmra.mxu0 %v562
    %v659 = vpop.f32.mrf.mxu0
    %v660 = vadd.f32 0.0, %v659
    %v661 = vpop.f32.mrf.mxu0
    %662 = vmatprep.mubr.f32.mxu0 0.0
    %663 = vmatmul.mubr.f32.gmra.mxu0 %v565
    %v664 = vpop.f32.mrf.mxu0
    %v665 = vadd.f32 0.0, %v664
    %v666 = vpop.f32.mrf.mxu0
    %667 = vmatprep.mubr.f32.mxu0 0.0
    %668 = vmatmul.mubr.f32.gmra.mxu0 %v568
    %v669 = vpop.f32.mrf.mxu0
    %v670 = vadd.f32 0.0, %v669
    %v671 = vpop.f32.mrf.mxu0
    %672 = vmatprep.mubr.f32.mxu0 0.0
    %673 = vmatmul.mubr.f32.gmra.mxu0 %v571
    %v674 = vpop.f32.mrf.mxu0
    %v675 = vadd.f32 0.0, %v674
    %v676 = vpop.f32.mrf.mxu0
    %677 = vdwg.mxu0
    %vm678 = vcmask 7168
    %v679 = vsel %vm678, %v640, 0.0
    %v680 = vsel %vm678, %v645, 0.0
    %v681 = vadd.f32 %v679, %v680
    %682 = vadd.xlane.f32.xlu0 %v681
    %v683 = vpop.xlane.xlu0 %682
    %v684 = vrot.slane %v683, 4
    %v685 = vadd.f32 %v683, %v684
    %v686 = vrot.slane %v685, 2
    %v687 = vadd.f32 %v685, %v686
    %v688 = vrot.slane %v687, 1
    %v689 = vadd.f32 %v687, %v688
    %s690 = vtos %v689
    %693 = vrot.lane.b32.xlu0 %v650, 127
    %v694 = vpop.permute.xlu0 %693
    %695 = vrot.lane.b32.xlu0 %v655, 127
    %v696 = vpop.permute.xlu0 %695
    %701 = vrot.lane.b32.xlu0 %v670, 1
    %v702 = vpop.permute.xlu0 %701
    %703 = vrot.lane.b32.xlu0 %v675, 1
    %v704 = vpop.permute.xlu0 %703
    %v707 = vsel %vm678, %v694, %v660
    %v708 = vsel %vm678, %v696, %v665
    %vm709 = vcmask 15360
    %v710 = vsel %vm709, %v707, %v702
    %v711 = vsel %vm709, %v708, %v704
    %712 = vrot.lane.b32.xlu0 %v19, 1
    %v713 = vpop.permute.xlu0 %712
    %714 = vrot.lane.b32.xlu0 %v20, 1
    %v715 = vpop.permute.xlu0 %714
    %718 = vrot.lane.b32.xlu0 %v21, 2
    %v719 = vpop.permute.xlu0 %718
    %720 = vrot.lane.b32.xlu0 %v22, 2
    %v721 = vpop.permute.xlu0 %720
    %v724 = vsel %vm678, %v17, %v713
    %v725 = vsel %vm678, %v18, %v715
    %v726 = vsel %vm709, %v724, %v719
    %v727 = vsel %vm709, %v725, %v721
    %728 = vxpose.xlu0.b32.start [1/16] %v726, 128
    %729 = vxpose.xlu0.b32.cont [2/16] %v727, 128
    %730 = vxpose.xlu0.b32.cont [3/16] 0.0, 128
    %731 = vxpose.xlu0.b32.cont [4/16] 0.0, 128
    %732 = vxpose.xlu0.b32.cont [5/16] 0.0, 128
    %733 = vxpose.xlu0.b32.cont [6/16] 0.0, 128
    %734 = vxpose.xlu0.b32.cont [7/16] 0.0, 128
    %735 = vxpose.xlu0.b32.cont [8/16] 0.0, 128
    %736 = vxpose.xlu0.b32.cont [9/16] 0.0, 128
    %737 = vxpose.xlu0.b32.cont [10/16] 0.0, 128
    %738 = vxpose.xlu0.b32.cont [11/16] 0.0, 128
    %739 = vxpose.xlu0.b32.cont [12/16] 0.0, 128
    %740 = vxpose.xlu0.b32.cont [13/16] 0.0, 128
    %741 = vxpose.xlu0.b32.cont [14/16] 0.0, 128
    %742 = vxpose.xlu0.b32.cont [15/16] 0.0, 128
    %743 = vxpose.xlu0.b32.end [16/16] 0.0, 128
    %v744 = vpop.trf.xlu0
    %v745 = vpop.trf.xlu0
    %v746 = vpop.trf.xlu0
    %v747 = vpop.trf.xlu0
    %v748 = vpop.trf.xlu0
    %v749 = vpop.trf.xlu0
    %v750 = vpop.trf.xlu0
    %v751 = vpop.trf.xlu0
    %v752 = vpop.trf.xlu0
    %v753 = vpop.trf.xlu0
    %v754 = vpop.trf.xlu0
    %v755 = vpop.trf.xlu0
    %v756 = vpop.trf.xlu0
    %v757 = vpop.trf.xlu0
    %v758 = vpop.trf.xlu0
    %v759 = vpop.trf.xlu0
    %v761 = vsel %vm26, %v744, 0
    %763 = vmatprep.subr.mxu0 0.0
    %764 = vmatpush1.msra.mxu0 0.0
    %765 = vmatprep.subr.mxu0 0.0
    %766 = vmatpush1.msra.mxu0 0.0
    %767 = vmatprep.subr.mxu0 0.0
    %768 = vmatpush1.msra.mxu0 0.0
    %769 = vmatprep.subr.mxu0 0.0
    %770 = vmatpush1.msra.mxu0 0.0
    %771 = vmatprep.subr.mxu0 0.0
    %772 = vmatpush1.msra.mxu0 0.0
    %773 = vmatprep.subr.mxu0 0.0
    %774 = vmatpush1.msra.mxu0 0.0
    %775 = vmatprep.subr.mxu0 0.0
    %776 = vmatpush1.msra.mxu0 0.0
    %777 = vmatprep.subr.mxu0 0.0
    %778 = vmatpush1.msra.mxu0 0.0
    %779 = vmatprep.subr.mxu0 0.0
    %780 = vmatpush1.msra.mxu0 0.0
    %781 = vmatprep.subr.mxu0 0.0
    %782 = vmatpush1.msra.mxu0 0.0
    %783 = vmatprep.subr.mxu0 0.0
    %784 = vmatpush1.msra.mxu0 0.0
    %785 = vmatprep.subr.mxu0 0.0
    %786 = vmatpush1.msra.mxu0 0.0
    %787 = vmatprep.subr.mxu0 0.0
    %788 = vmatpush1.msra.mxu0 0.0
    %789 = vmatprep.subr.mxu0 0.0
    %790 = vmatpush1.msra.mxu0 0.0
    %791 = vmatprep.subr.mxu0 0.0
    %792 = vmatpush1.msra.mxu0 %v711
    %793 = vmatprep.subr.mxu0 0.0
    %794 = vmatpush1.msra.mxu0 %v710
    %795 = vmatprep.subr.mxu0 0.0
    %796 = vmatpush2.msra.mxu0 0.0
    %797 = vmatprep.subr.mxu0 0.0
    %798 = vmatpush2.msra.mxu0 0.0
    %799 = vmatprep.subr.mxu0 0.0
    %800 = vmatpush2.msra.mxu0 0.0
    %801 = vmatprep.subr.mxu0 0.0
    %802 = vmatpush2.msra.mxu0 0.0
    %803 = vmatprep.subr.mxu0 0.0
    %804 = vmatpush2.msra.mxu0 0.0
    %805 = vmatprep.subr.mxu0 0.0
    %806 = vmatpush2.msra.mxu0 0.0
    %807 = vmatprep.subr.mxu0 0.0
    %808 = vmatpush2.msra.mxu0 0.0
    %809 = vmatprep.subr.mxu0 0.0
    %810 = vmatpush2.msra.mxu0 0.0
    %811 = vmatprep.subr.mxu0 0.0
    %812 = vmatpush2.msra.mxu0 0.0
    %813 = vmatprep.subr.mxu0 0.0
    %814 = vmatpush2.msra.mxu0 0.0
    %815 = vmatprep.subr.mxu0 0.0
    %816 = vmatpush2.msra.mxu0 0.0
    %817 = vmatprep.subr.mxu0 0.0
    %818 = vmatpush2.msra.mxu0 0.0
    %819 = vmatprep.subr.mxu0 0.0
    %820 = vmatpush2.msra.mxu0 0.0
    %821 = vmatprep.subr.mxu0 0.0
    %822 = vmatpush2.msra.mxu0 0.0
    %823 = vmatprep.subr.mxu0 0.0
    %824 = vmatpush2.msra.mxu0 0.0
    %825 = vmatprep.subr.mxu0 0.0
    %826 = vmatpush2.msra.mxu0 0.0
    %827 = vmatprep.mubr.f32.mxu0 0.0
    %828 = vmatmul.mubr.f32.gmra.mxu0 %v761
    %v829 = vpop.f32.mrf.mxu0
    %v830 = vadd.f32 0.0, %v829
    %v831 = vpop.f32.mrf.mxu0
    %832 = vdwg.mxu0
    %v833 = vlaneseq
    %v834 = vshrl.u32 %v833, 7
    %v835 = vlaneseq
    %v836 = vand.u32 %v835, 127
    %vm837 = vcmp.eq.s32.totalorder %v834, %v836
    %v838 = vsel %vm837, 1, 0
    %v839 = vcvt.s32.f32 %v838
    %840 = vxpose.xlu0.b32.start [1/16] %v710, 128
    %841 = vxpose.xlu0.b32.cont [2/16] %v711, 128
    %842 = vxpose.xlu0.b32.cont [3/16] 0.0, 128
    %843 = vxpose.xlu0.b32.cont [4/16] 0.0, 128
    %844 = vxpose.xlu0.b32.cont [5/16] 0.0, 128
    %845 = vxpose.xlu0.b32.cont [6/16] 0.0, 128
    %846 = vxpose.xlu0.b32.cont [7/16] 0.0, 128
    %847 = vxpose.xlu0.b32.cont [8/16] 0.0, 128
    %848 = vxpose.xlu0.b32.cont [9/16] 0.0, 128
    %849 = vxpose.xlu0.b32.cont [10/16] 0.0, 128
    %850 = vxpose.xlu0.b32.cont [11/16] 0.0, 128
    %851 = vxpose.xlu0.b32.cont [12/16] 0.0, 128
    %852 = vxpose.xlu0.b32.cont [13/16] 0.0, 128
    %853 = vxpose.xlu0.b32.cont [14/16] 0.0, 128
    %854 = vxpose.xlu0.b32.cont [15/16] 0.0, 128
    %855 = vxpose.xlu0.b32.end [16/16] 0.0, 128
    %v856 = vpop.trf.xlu0
    %v857 = vpop.trf.xlu0
    %v858 = vpop.trf.xlu0
    %v859 = vpop.trf.xlu0
    %v860 = vpop.trf.xlu0
    %v861 = vpop.trf.xlu0
    %v862 = vpop.trf.xlu0
    %v863 = vpop.trf.xlu0
    %v864 = vpop.trf.xlu0
    %v865 = vpop.trf.xlu0
    %v866 = vpop.trf.xlu0
    %v867 = vpop.trf.xlu0
    %v868 = vpop.trf.xlu0
    %v869 = vpop.trf.xlu0
    %v870 = vpop.trf.xlu0
    %v871 = vpop.trf.xlu0
    %v873 = vsel %vm26, %v856, 0
    %875 = vmatprep.subr.mxu0 0.0
    %876 = vmatpush1.msra.mxu0 0.0
    %877 = vmatprep.subr.mxu0 0.0
    %878 = vmatpush1.msra.mxu0 0.0
    %879 = vmatprep.subr.mxu0 0.0
    %880 = vmatpush1.msra.mxu0 0.0
    %881 = vmatprep.subr.mxu0 0.0
    %882 = vmatpush1.msra.mxu0 0.0
    %883 = vmatprep.subr.mxu0 0.0
    %884 = vmatpush1.msra.mxu0 0.0
    %885 = vmatprep.subr.mxu0 0.0
    %886 = vmatpush1.msra.mxu0 0.0
    %887 = vmatprep.subr.mxu0 0.0
    %888 = vmatpush1.msra.mxu0 0.0
    %889 = vmatprep.subr.mxu0 0.0
    %890 = vmatpush1.msra.mxu0 0.0
    %891 = vmatprep.subr.mxu0 0.0
    %892 = vmatpush1.msra.mxu0 0.0
    %893 = vmatprep.subr.mxu0 0.0
    %894 = vmatpush1.msra.mxu0 0.0
    %895 = vmatprep.subr.mxu0 0.0
    %896 = vmatpush1.msra.mxu0 0.0
    %897 = vmatprep.subr.mxu0 0.0
    %898 = vmatpush1.msra.mxu0 0.0
    %899 = vmatprep.subr.mxu0 0.0
    %900 = vmatpush1.msra.mxu0 0.0
    %901 = vmatprep.subr.mxu0 0.0
    %902 = vmatpush1.msra.mxu0 0.0
    %903 = vmatprep.subr.mxu0 0.0
    %904 = vmatpush1.msra.mxu0 %v727
    %905 = vmatprep.subr.mxu0 0.0
    %906 = vmatpush1.msra.mxu0 %v726
    %907 = vmatprep.subr.mxu0 0.0
    %908 = vmatpush2.msra.mxu0 0.0
    %909 = vmatprep.subr.mxu0 0.0
    %910 = vmatpush2.msra.mxu0 0.0
    %911 = vmatprep.subr.mxu0 0.0
    %912 = vmatpush2.msra.mxu0 0.0
    %913 = vmatprep.subr.mxu0 0.0
    %914 = vmatpush2.msra.mxu0 0.0
    %915 = vmatprep.subr.mxu0 0.0
    %916 = vmatpush2.msra.mxu0 0.0
    %917 = vmatprep.subr.mxu0 0.0
    %918 = vmatpush2.msra.mxu0 0.0
    %919 = vmatprep.subr.mxu0 0.0
    %920 = vmatpush2.msra.mxu0 0.0
    %921 = vmatprep.subr.mxu0 0.0
    %922 = vmatpush2.msra.mxu0 0.0
    %923 = vmatprep.subr.mxu0 0.0
    %924 = vmatpush2.msra.mxu0 0.0
    %925 = vmatprep.subr.mxu0 0.0
    %926 = vmatpush2.msra.mxu0 0.0
    %927 = vmatprep.subr.mxu0 0.0
    %928 = vmatpush2.msra.mxu0 0.0
    %929 = vmatprep.subr.mxu0 0.0
    %930 = vmatpush2.msra.mxu0 0.0
    %931 = vmatprep.subr.mxu0 0.0
    %932 = vmatpush2.msra.mxu0 0.0
    %933 = vmatprep.subr.mxu0 0.0
    %934 = vmatpush2.msra.mxu0 0.0
    %935 = vmatprep.subr.mxu0 0.0
    %936 = vmatpush2.msra.mxu0 0.0
    %937 = vmatprep.subr.mxu0 0.0
    %938 = vmatpush2.msra.mxu0 0.0
    %939 = vmatprep.mubr.f32.mxu0 0.0
    %940 = vmatmul.mubr.f32.gmra.mxu0 %v873
    %v941 = vpop.f32.mrf.mxu0
    %v942 = vadd.f32 %v830, %v941
    %v943 = vpop.f32.mrf.mxu0
    %944 = vdwg.mxu0
    %v945 = vmul.f32 %v942, 0.5
    %v946 = vstv %s690
    %v947 = vmul.f32 %v946, %v839
    %v948 = vadd.f32 %v945, %v947
    %vm949 = vcmask 18432
    %950 = vst.msk [vmem:[#allocation2] sm:$0x7] %vm949, %v948
    // Predicated region
    $region14: #{tpu_custom_call.1} parent=1 // pred_check
      _
    $region15: #{tpu_custom_call.1} parent=1 // pred_check_branch
      %952 = sbr.rel (0) target = $region17
    $region16: #{tpu_custom_call.1} parent=1 // pred_region
      %s954 = ssub.s32 64, 64
      %955 = vsyncadd [#allocation3], %s954
      %s957 = sshll.u32 [#allocation2], 4
      %s958 = int_to_ptr.vmem [resolvable:$true] %s957
      %960 = dma.vmem_to_hbm [thread:$0]  %s958, 64, %s3, [#allocation3]
    $region17: #{tpu_custom_call.1} parent=1 // pred_fallthru
      _
    // Predicated region
    $region18: #{tpu_custom_call.1} parent=1 // pred_check
      _
    $region19: #{tpu_custom_call.1} parent=1 // pred_check_branch
      %962 = sbr.rel (0) target = $region21
    $region20: #{tpu_custom_call.1} parent=1 // pred_region
      %963 = dma.done [#allocation3], 64
    $region21: #{tpu_custom_call.1} parent=1 // pred_fallthru
      _
    %964 = vsyncpa [#allocation3], 1

</llo_original>
